<compile_context>
chip_gen: v7x
topology: tpu7x:2x2x1
jax: 0.10.0
libtpu: 0.0.40
codegen_flags: <defaults>
</compile_context>

<pallas_src>
import functools

import jax
import jax.numpy as jnp
from jax.experimental import pallas as pl
from jax.experimental.pallas import tpu as pltpu


def _round_up(n, m):
    return ((n + m - 1) // m) * m


def vae_fader_kernel(
    # batch-tiled activations / noise
    x_ref, y_ref, eps_ref,
    # VMEM-resident parameters (constant index_map -> DMA'd once)
    w_enc_ref, b_enc_ref,
    w_head_ref, b_head_ref,          # fused [mu | var] head
    w_dec_ref, b_dec_ref,            # decoder over concat([z, y], -1)
    # outputs (batch-tiled)
    zkl_ref, recon_ref,
    *, latent,
):
    # ---- encoder (Linear + tanh); x.float() subsumed by the f32 accumulate ----
    x_bf = x_ref[...].astype(jnp.bfloat16)
    h = jnp.tanh(
        jnp.dot(x_bf, w_enc_ref[...], preferred_element_type=jnp.float32)
        + b_enc_ref[...]
    )

    # ---- fused mu / var heads: one MXU pass, split with static lane slices ----
    head = (
        jnp.dot(h.astype(jnp.bfloat16), w_head_ref[...],
                preferred_element_type=jnp.float32)
        + b_head_ref[...]
    )
    mu = head[:, :latent]
    u = head[:, latent:]
    var = jnp.logaddexp(u, 0.0)                       # F.softplus
    # Stable log(softplus(u)): softplus underflows for u << 0, but
    # log(softplus(u)) -> u there, so select the asymptote instead of -inf.
    log_var = jnp.where(u < -10.0, u, jnp.log(jnp.maximum(var, 1e-38)))

    # ---- reparameterized sample: Normal(mu, var).rsample() (var = scale) ----
    z = mu + var * eps_ref[...]

    # ---- per-sample KL (mean over latent axis, like the reference regularize) ----
    kl = -0.5 * jnp.mean(1.0 + log_var - mu * mu - var, axis=-1, keepdims=True)

    # ---- single lane-dense [z | kl | 0-pad] output slab (unmasked stores) ----
    pad_w = zkl_ref.shape[-1] - latent - 1
    zkl_ref[...] = jnp.concatenate(
        [z, kl, jnp.zeros((z.shape[0], pad_w), jnp.float32)], axis=-1)

    # ---- decoder: one MXU pass over concat([z, y], -1) ----
    zy = jnp.concatenate(
        [z.astype(jnp.bfloat16), y_ref[...].astype(jnp.bfloat16)], axis=-1)
    recon_ref[...] = (
        jnp.dot(zy, w_dec_ref[...], preferred_element_type=jnp.float32)
        + b_dec_ref[...]
    )


@functools.partial(jax.jit, static_argnames=("tb",))
def vae_fader_forward(x, y, eps, params, *, tb=256):
    """Returns (z, recon, z_loss) like VAEFader.forward."""
    B, input_size = x.shape
    n_attrs = y.shape[1]
    latent = eps.shape[1]
    enc_hidden = params["w_enc"].shape[1]
    out_size = params["w_dec"].shape[1]

    # Batch tile: 256 by default (fills a v6e/v7x MXU push, amortizes per-step
    # overhead); clamp to round_up(B, 8) so small batches run as one grid step.
    tb = min(tb, _round_up(B, 8))
    n_tiles = (B + tb - 1) // tb
    bp = n_tiles * tb
    if bp != B:
        x = jnp.pad(x, ((0, bp - B), (0, 0)))
        y = jnp.pad(y, ((0, bp - B), (0, 0)))
        eps = jnp.pad(eps, ((0, bp - B), (0, 0)))

    zkl_w = _round_up(latent + 1, 128)   # lane-dense combined z / kl stream

    zkl, recon = pl.pallas_call(
        functools.partial(vae_fader_kernel, latent=latent),
        out_shape=(
            jax.ShapeDtypeStruct((bp, zkl_w), jnp.float32),     # [z | kl | 0]
            jax.ShapeDtypeStruct((bp, out_size), jnp.float32),  # recon
        ),
        grid_spec=pltpu.PrefetchScalarGridSpec(
            num_scalar_prefetch=0,
            grid=(n_tiles,),
            in_specs=[
                # batch-tiled activations / noise (pipelined, double-buffered)
                pl.BlockSpec((tb, input_size), lambda i: (i, 0)),
                pl.BlockSpec((tb, n_attrs), lambda i: (i, 0)),
                pl.BlockSpec((tb, latent), lambda i: (i, 0)),
                # weights / biases: constant index_map -> DMA'd once, resident
                pl.BlockSpec((input_size, enc_hidden), lambda i: (0, 0)),
                pl.BlockSpec((1, enc_hidden), lambda i: (0, 0)),
                pl.BlockSpec((enc_hidden, 2 * latent), lambda i: (0, 0)),
                pl.BlockSpec((1, 2 * latent), lambda i: (0, 0)),
                pl.BlockSpec((latent + n_attrs, out_size), lambda i: (0, 0)),
                pl.BlockSpec((1, out_size), lambda i: (0, 0)),
            ],
            out_specs=[
                pl.BlockSpec((tb, zkl_w), lambda i: (i, 0)),
                pl.BlockSpec((tb, out_size), lambda i: (i, 0)),
            ],
        ),
        compiler_params=pltpu.CompilerParams(
            dimension_semantics=("parallel",),   # megacore sharding on v7x
            vmem_limit_bytes=32 * 1024 * 1024,
        ),
    )(
        x, y, eps,
        params["w_enc"], params["b_enc"],
        params["w_head"], params["b_head"],
        params["w_dec"], params["b_dec"],
    )

    z = zkl[:B, :latent]
    kl = zkl[:B, latent]
    recon = recon[:B]
    z_loss = jnp.sum(kl) / B               # == kl_div.sum() / n_batch
    return z, recon, z_loss


def init_params(key, input_size, enc_hidden, latent, n_attrs):
    """Deterministic parameter init. Linear weights stored as (in, out);
    MXU-operand weights in bf16, biases in f32."""
    ks = jax.random.split(key, 4)

    def lin(k, fan_in, fan_out):
        bound = 1.0 / (fan_in ** 0.5)
        kw, kb = jax.random.split(k)
        w = jax.random.uniform(kw, (fan_in, fan_out), jnp.float32, -bound, bound)
        b = jax.random.uniform(kb, (1, fan_out), jnp.float32, -bound, bound)
        return w, b

    w_enc, b_enc = lin(ks[0], input_size, enc_hidden)
    w_mu, b_mu = lin(ks[1], enc_hidden, latent)
    w_var, b_var = lin(ks[2], enc_hidden, latent)
    # decoder: Linear(latent + n_attrs -> input_size), fed concat([z, y])
    w_dec, b_dec = lin(ks[3], latent + n_attrs, input_size)

    # fused [mu | var] head -> single MXU pass in the kernel
    w_head = jnp.concatenate([w_mu, w_var], axis=1)
    b_head = jnp.concatenate([b_mu, b_var], axis=1)

    bf = jnp.bfloat16
    return dict(
        w_enc=w_enc.astype(bf), b_enc=b_enc,
        w_head=w_head.astype(bf), b_head=b_head,
        w_dec=w_dec.astype(bf), b_dec=b_dec,
    )


if __name__ == "__main__":
    # config['data']['input_size'], config['model']['enc_hidden_size'],
    # config['model']['latent_size'], number of fader attributes.
    # Feature dims lane-aligned (multiples of 128) for unmasked stores.
    B, INPUT, ENC_H, LATENT, N_ATTRS = 32, 128, 128, 16, 4

    key = jax.random.PRNGKey(0)
    k_x, k_y, k_eps, k_p = jax.random.split(key, 4)

    x = jax.random.normal(k_x, (B, INPUT), jnp.float32)
    y = jax.random.normal(k_y, (B, N_ATTRS), jnp.float32)
    eps = jax.random.normal(k_eps, (B, LATENT), jnp.float32)   # rsample noise
    params = init_params(k_p, INPUT, ENC_H, LATENT, N_ATTRS)

    z, recon, z_loss = vae_fader_forward(x, y, eps, params)
    jax.block_until_ready((z, recon, z_loss))

    assert z.shape == (B, LATENT)
    assert recon.shape == (B, INPUT)
    assert z_loss.shape == ()
    assert bool(jnp.all(jnp.isfinite(z))), "z not finite"
    assert bool(jnp.all(jnp.isfinite(recon))), "recon not finite"
    assert bool(jnp.isfinite(z_loss)), "z_loss not finite"

    print("KERNEL_OK")
</pallas_src>

<mosaic_0001>
module attributes {stable_mosaic.version = 11 : i64} {
  func.func @vae_fader_kernel(%arg0: i32, %arg1: memref<32x128xf32, #tpu.memory_space<vmem>>, %arg2: memref<32x4xf32, #tpu.memory_space<vmem>>, %arg3: memref<32x16xf32, #tpu.memory_space<vmem>>, %arg4: memref<128x128xbf16, #tpu.memory_space<vmem>>, %arg5: memref<1x128xf32, #tpu.memory_space<vmem>>, %arg6: memref<128x32xbf16, #tpu.memory_space<vmem>>, %arg7: memref<1x32xf32, #tpu.memory_space<vmem>>, %arg8: memref<20x128xbf16, #tpu.memory_space<vmem>>, %arg9: memref<1x128xf32, #tpu.memory_space<vmem>>, %arg10: memref<32x128xf32, #tpu.memory_space<vmem>>, %arg11: memref<32x128xf32, #tpu.memory_space<vmem>>) attributes {dimension_semantics = [#tpu.dimension_semantics<parallel>], iteration_bounds = array<i64: 1>, scalar_prefetch = 0 : i64, scratch_operands = 0 : i64, tpu.core_type = #tpu.core_type<tc>, window_params = [{transform_indices = @transform_0, window_bounds = array<i64: 32, 128>}, {transform_indices = @transform_1, window_bounds = array<i64: 32, 4>}, {transform_indices = @transform_2, window_bounds = array<i64: 32, 16>}, {pipeline_mode = #tpu.pipeline_mode<synchronous>, transform_indices = @transform_3, window_bounds = array<i64: 128, 128>}, {pipeline_mode = #tpu.pipeline_mode<synchronous>, transform_indices = @transform_4, window_bounds = array<i64: 1, 128>}, {pipeline_mode = #tpu.pipeline_mode<synchronous>, transform_indices = @transform_5, window_bounds = array<i64: 128, 32>}, {pipeline_mode = #tpu.pipeline_mode<synchronous>, transform_indices = @transform_6, window_bounds = array<i64: 1, 32>}, {pipeline_mode = #tpu.pipeline_mode<synchronous>, transform_indices = @transform_7, window_bounds = array<i64: 20, 128>}, {pipeline_mode = #tpu.pipeline_mode<synchronous>, transform_indices = @transform_8, window_bounds = array<i64: 1, 128>}, {transform_indices = @transform_9, window_bounds = array<i64: 32, 128>}, {transform_indices = @transform_10, window_bounds = array<i64: 32, 128>}]} {
    %c0 = arith.constant 0 : index
    %c0_0 = arith.constant 0 : index
    %0 = vector.load %arg1[%c0, %c0_0] : memref<32x128xf32, #tpu.memory_space<vmem>>, vector<32x128xf32>
    %1 = arith.truncf %0 : vector<32x128xf32> to vector<32x128xbf16>
    %c0_1 = arith.constant 0 : index
    %c0_2 = arith.constant 0 : index
    %2 = vector.load %arg4[%c0_1, %c0_2] : memref<128x128xbf16, #tpu.memory_space<vmem>>, vector<128x128xbf16>
    %cst = arith.constant dense<0.000000e+00> : vector<32x128xf32>
    %3 = tpu.matmul %1, %2, %cst {dimension_numbers = #tpu.dot_dimension_numbers<[1], [0], [0], [1], [0, 0, 1, 1], [], []>} : vector<32x128xbf16>, vector<128x128xbf16>, vector<32x128xf32> -> vector<32x128xf32>
    %c0_3 = arith.constant 0 : index
    %c0_4 = arith.constant 0 : index
    %4 = vector.load %arg5[%c0_3, %c0_4] : memref<1x128xf32, #tpu.memory_space<vmem>>, vector<1x128xf32>
    %5 = vector.broadcast %4 : vector<1x128xf32> to vector<32x128xf32>
    %6 = arith.addf %3, %5 : vector<32x128xf32>
    %7 = math.tanh %6 : vector<32x128xf32>
    %8 = arith.truncf %7 : vector<32x128xf32> to vector<32x128xbf16>
    %c0_5 = arith.constant 0 : index
    %c0_6 = arith.constant 0 : index
    %9 = vector.load %arg6[%c0_5, %c0_6] : memref<128x32xbf16, #tpu.memory_space<vmem>>, vector<128x32xbf16>
    %cst_7 = arith.constant dense<0.000000e+00> : vector<32x32xf32>
    %10 = tpu.matmul %8, %9, %cst_7 {dimension_numbers = #tpu.dot_dimension_numbers<[1], [0], [0], [1], [0, 0, 1, 1], [], []>} : vector<32x128xbf16>, vector<128x32xbf16>, vector<32x32xf32> -> vector<32x32xf32>
    %c0_8 = arith.constant 0 : index
    %c0_9 = arith.constant 0 : index
    %11 = vector.load %arg7[%c0_8, %c0_9] : memref<1x32xf32, #tpu.memory_space<vmem>>, vector<1x32xf32>
    %12 = vector.broadcast %11 : vector<1x32xf32> to vector<32x32xf32>
    %13 = arith.addf %10, %12 : vector<32x32xf32>
    %14 = vector.extract_strided_slice %13 {offsets = [0, 0], sizes = [32, 16], strides = [1, 1]} : vector<32x32xf32> to vector<32x16xf32>
    %15 = vector.extract_strided_slice %13 {offsets = [0, 16], sizes = [32, 16], strides = [1, 1]} : vector<32x32xf32> to vector<32x16xf32>
    %cst_10 = arith.constant 0.000000e+00 : f32
    %16 = vector.broadcast %cst_10 : f32 to vector<32x16xf32>
    %17 = arith.maximumf %15, %16 : vector<32x16xf32>
    %18 = vector.broadcast %cst_10 : f32 to vector<32x16xf32>
    %19 = arith.subf %15, %18 : vector<32x16xf32>
    %20 = arith.cmpf one, %19, %19 : vector<32x16xf32>
    %21 = vector.broadcast %cst_10 : f32 to vector<32x16xf32>
    %22 = arith.addf %15, %21 : vector<32x16xf32>
    %23 = math.absf %19 : vector<32x16xf32>
    %cst_11 = arith.constant 0.000000e+00 : f32
    %24 = vector.broadcast %cst_11 : f32 to vector<32x16xf32>
    %25 = arith.subf %24, %23 : vector<32x16xf32>
    %26 = math.exp %25 : vector<32x16xf32>
    %27 = math.log1p %26 : vector<32x16xf32>
    %28 = arith.addf %17, %27 : vector<32x16xf32>
    %29 = arith.select %20, %22, %28 : vector<32x16xi1>, vector<32x16xf32>
    %cst_12 = arith.constant -1.000000e+01 : f32
    %30 = vector.broadcast %cst_12 : f32 to vector<32x16xf32>
    %31 = arith.cmpf olt, %15, %30 : vector<32x16xf32>
    %cst_13 = arith.constant 9.99999935E-39 : f32
    %32 = vector.broadcast %cst_13 : f32 to vector<32x16xf32>
    %33 = arith.maximumf %29, %32 : vector<32x16xf32>
    %34 = math.log %33 : vector<32x16xf32>
    %35 = arith.select %31, %15, %34 : vector<32x16xi1>, vector<32x16xf32>
    %c0_14 = arith.constant 0 : index
    %c0_15 = arith.constant 0 : index
    %36 = vector.load %arg3[%c0_14, %c0_15] : memref<32x16xf32, #tpu.memory_space<vmem>>, vector<32x16xf32>
    %37 = arith.mulf %29, %36 : vector<32x16xf32>
    %38 = arith.addf %14, %37 : vector<32x16xf32>
    %cst_16 = arith.constant 1.000000e+00 : f32
    %39 = vector.broadcast %cst_16 : f32 to vector<32x16xf32>
    %40 = arith.addf %39, %35 : vector<32x16xf32>
    %41 = arith.mulf %14, %14 : vector<32x16xf32>
    %42 = arith.subf %40, %41 : vector<32x16xf32>
    %43 = arith.subf %42, %29 : vector<32x16xf32>
    %cst_17 = arith.constant dense<0.000000e+00> : vector<32xf32>
    %44 = vector.multi_reduction <add>, %43, %cst_17 [1] : vector<32x16xf32> to vector<32xf32>
    %45 = vector.shape_cast %44 : vector<32xf32> to vector<32x1xf32>
    %cst_18 = arith.constant 1.600000e+01 : f32
    %46 = vector.broadcast %cst_18 : f32 to vector<32x1xf32>
    %47 = arith.divf %45, %46 : vector<32x1xf32>
    %cst_19 = arith.constant -5.000000e-01 : f32
    %48 = vector.broadcast %cst_19 : f32 to vector<32x1xf32>
    %49 = arith.mulf %48, %47 : vector<32x1xf32>
    %cst_20 = arith.constant 0.000000e+00 : f32
    %50 = vector.broadcast %cst_20 : f32 to vector<32x111xf32>
    %51 = tpu.concatenate %38, %49, %50 in 1 : vector<32x16xf32>, vector<32x1xf32>, vector<32x111xf32> -> vector<32x128xf32>
    %c0_21 = arith.constant 0 : index
    %c0_22 = arith.constant 0 : index
    %52 = vector.load %arg10[%c0_21, %c0_22] : memref<32x128xf32, #tpu.memory_space<vmem>>, vector<32x128xf32>
    tpu.vector_store %arg10[%c0_21, %c0_22], %51 {strides = array<i32>} : memref<32x128xf32, #tpu.memory_space<vmem>>, vector<32x128xf32>,
    %53 = arith.truncf %38 : vector<32x16xf32> to vector<32x16xbf16>
    %c0_23 = arith.constant 0 : index
    %c0_24 = arith.constant 0 : index
    %54 = vector.load %arg2[%c0_23, %c0_24] : memref<32x4xf32, #tpu.memory_space<vmem>>, vector<32x4xf32>
    %55 = arith.truncf %54 : vector<32x4xf32> to vector<32x4xbf16>
    %56 = tpu.concatenate %53, %55 in 1 : vector<32x16xbf16>, vector<32x4xbf16> -> vector<32x20xbf16>
    %c0_25 = arith.constant 0 : index
    %c0_26 = arith.constant 0 : index
    %57 = vector.load %arg8[%c0_25, %c0_26] : memref<20x128xbf16, #tpu.memory_space<vmem>>, vector<20x128xbf16>
    %cst_27 = arith.constant dense<0.000000e+00> : vector<32x128xf32>
    %58 = tpu.matmul %56, %57, %cst_27 {dimension_numbers = #tpu.dot_dimension_numbers<[1], [0], [0], [1], [0, 0, 1, 1], [], []>} : vector<32x20xbf16>, vector<20x128xbf16>, vector<32x128xf32> -> vector<32x128xf32>
    %c0_28 = arith.constant 0 : index
    %c0_29 = arith.constant 0 : index
    %59 = vector.load %arg9[%c0_28, %c0_29] : memref<1x128xf32, #tpu.memory_space<vmem>>, vector<1x128xf32>
    %60 = vector.broadcast %59 : vector<1x128xf32> to vector<32x128xf32>
    %61 = arith.addf %58, %60 : vector<32x128xf32>
    %c0_30 = arith.constant 0 : index
    %c0_31 = arith.constant 0 : index
    %62 = vector.load %arg11[%c0_30, %c0_31] : memref<32x128xf32, #tpu.memory_space<vmem>>, vector<32x128xf32>
    tpu.vector_store %arg11[%c0_30, %c0_31], %61 {strides = array<i32>} : memref<32x128xf32, #tpu.memory_space<vmem>>, vector<32x128xf32>,
    return
  }
  func.func @transform_0(%arg0: i32) -> (i32, i32) {
    %c0_i32 = arith.constant 0 : i32
    %c0_i32_0 = arith.constant 0 : i32
    return %arg0, %c0_i32 : i32, i32
  }
  func.func @transform_1(%arg0: i32) -> (i32, i32) {
    %c0_i32 = arith.constant 0 : i32
    %c0_i32_0 = arith.constant 0 : i32
    return %arg0, %c0_i32 : i32, i32
  }
  func.func @transform_2(%arg0: i32) -> (i32, i32) {
    %c0_i32 = arith.constant 0 : i32
    %c0_i32_0 = arith.constant 0 : i32
    return %arg0, %c0_i32 : i32, i32
  }
  func.func @transform_3(%arg0: i32) -> (i32, i32) {
    %c0_i32 = arith.constant 0 : i32
    %c0_i32_0 = arith.constant 0 : i32
    %c0_i32_1 = arith.constant 0 : i32
    return %c0_i32, %c0_i32_0 : i32, i32
  }
  func.func @transform_4(%arg0: i32) -> (i32, i32) {
    %c0_i32 = arith.constant 0 : i32
    %c0_i32_0 = arith.constant 0 : i32
    %c0_i32_1 = arith.constant 0 : i32
    return %c0_i32, %c0_i32_0 : i32, i32
  }
  func.func @transform_5(%arg0: i32) -> (i32, i32) {
    %c0_i32 = arith.constant 0 : i32
    %c0_i32_0 = arith.constant 0 : i32
    %c0_i32_1 = arith.constant 0 : i32
    return %c0_i32, %c0_i32_0 : i32, i32
  }
  func.func @transform_6(%arg0: i32) -> (i32, i32) {
    %c0_i32 = arith.constant 0 : i32
    %c0_i32_0 = arith.constant 0 : i32
    %c0_i32_1 = arith.constant 0 : i32
    return %c0_i32, %c0_i32_0 : i32, i32
  }
  func.func @transform_7(%arg0: i32) -> (i32, i32) {
    %c0_i32 = arith.constant 0 : i32
    %c0_i32_0 = arith.constant 0 : i32
    %c0_i32_1 = arith.constant 0 : i32
    return %c0_i32, %c0_i32_0 : i32, i32
  }
  func.func @transform_8(%arg0: i32) -> (i32, i32) {
    %c0_i32 = arith.constant 0 : i32
    %c0_i32_0 = arith.constant 0 : i32
    %c0_i32_1 = arith.constant 0 : i32
    return %c0_i32, %c0_i32_0 : i32, i32
  }
  func.func @transform_9(%arg0: i32) -> (i32, i32) {
    %c0_i32 = arith.constant 0 : i32
    %c0_i32_0 = arith.constant 0 : i32
    return %arg0, %c0_i32 : i32, i32
  }
  func.func @transform_10(%arg0: i32) -> (i32, i32) {
    %c0_i32 = arith.constant 0 : i32
    %c0_i32_0 = arith.constant 0 : i32
    return %arg0, %c0_i32 : i32, i32
  }
}

</mosaic_0001>

<llo_original>
// kernel: vae_fader_forward.1
$region0: #{vae_fader_forward.1}
  #allocation0 [shape = 'u32[]', space=smem, size = 0x4, offset = 0x4, fixed_abs, tag = 'smem constant byte address 0x4 - core index']
  #allocation1 [shape = 'u32[144,128]{1,0:T(1,128)}', space=vmem, size = 0x12000, scoped, tag = 'internal scratch']
  %s0 = inlined_call_operand.vmem [shape: f32[32,128], index: 0, kind: input, shape index: {}]
  %s1 = inlined_call_operand.vmem [shape: f32[32,4], index: 1, kind: input, shape index: {}]
  %s2 = inlined_call_operand.vmem [shape: f32[32,16], index: 2, kind: input, shape index: {}]
  %s3 = inlined_call_operand.vmem [shape: bf16[128,128], index: 3, kind: input, shape index: {}]
  %s4 = inlined_call_operand.vmem [shape: f32[1,128], index: 4, kind: input, shape index: {}]
  %s5 = inlined_call_operand.vmem [shape: bf16[128,32], index: 5, kind: input, shape index: {}]
  %s6 = inlined_call_operand.vmem [shape: f32[1,32], index: 6, kind: input, shape index: {}]
  %s7 = inlined_call_operand.vmem [shape: bf16[20,128], index: 7, kind: input, shape index: {}]
  %s8 = inlined_call_operand.vmem [shape: f32[1,128], index: 8, kind: input, shape index: {}]
  %s9 = inlined_call_operand.vmem [shape: f32[32,128], index: 9, kind: output, shape index: {0}]
  %s10 = inlined_call_operand.hbm [shape: f32[32,128], index: 10, kind: output, shape index: {1}]
  %11 = xla_tuple %s9, %s10
  %s12 = sld [smem:[#allocation0]]
  $region54: #{vae_fader_forward.1} parent=0
    _
  %s14 = ssub.s32 1, %s12
  %s15 = scalar_select 0, %s14, %s12
  $region1: #{vae_fader_forward.1} parent=0
    #allocation2 [shape = 'u8[16384]{0}', space=vmem, size = 0x4000, scoped, tag = 'output window, operand 1, single buffered']
    #allocation3 [shape = 's32[1]{0}', space=sflag, size = 0x4, scoped, tag = 'scoped memory for vae_fader_forward.1']
    %16 = vsyncpa [#allocation3], 0
    // Predicated region
    $region2: #{vae_fader_forward.1} parent=1 // pred_check
      _
    $region3: #{vae_fader_forward.1} parent=1 // pred_check_branch
      %18 = sbr.rel (0) target = $region5
    $region4: #{vae_fader_forward.1} parent=1 // pred_region
      _
    $region5: #{vae_fader_forward.1} parent=1 // pred_fallthru
      _
    // Predicated region
    $region6: #{vae_fader_forward.1} parent=1 // pred_check
      _
    $region7: #{vae_fader_forward.1} parent=1 // pred_check_branch
      %20 = sbr.rel (0) target = $region9
    $region8: #{vae_fader_forward.1} parent=1 // pred_region
      _
    $region9: #{vae_fader_forward.1} parent=1 // pred_fallthru
      _
    // Predicated region
    $region10: #{vae_fader_forward.1} parent=1 // pred_check
      _
    $region11: #{vae_fader_forward.1} parent=1 // pred_check_branch
      %22 = sbr.rel (0) target = $region13
    $region12: #{vae_fader_forward.1} parent=1 // pred_region
      _
    $region13: #{vae_fader_forward.1} parent=1 // pred_fallthru
      _
    // Predicated region
    $region14: #{vae_fader_forward.1} parent=1 // pred_check
      _
    $region15: #{vae_fader_forward.1} parent=1 // pred_check_branch
      %24 = sbr.rel (0) target = $region17
    $region16: #{vae_fader_forward.1} parent=1 // pred_region
      _
    $region17: #{vae_fader_forward.1} parent=1 // pred_fallthru
      _
    // Predicated region
    $region18: #{vae_fader_forward.1} parent=1 // pred_check
      _
    $region19: #{vae_fader_forward.1} parent=1 // pred_check_branch
      %26 = sbr.rel (0) target = $region21
    $region20: #{vae_fader_forward.1} parent=1 // pred_region
      _
    $region21: #{vae_fader_forward.1} parent=1 // pred_fallthru
      _
    // Predicated region
    $region22: #{vae_fader_forward.1} parent=1 // pred_check
      _
    $region23: #{vae_fader_forward.1} parent=1 // pred_check_branch
      %28 = sbr.rel (0) target = $region25
    $region24: #{vae_fader_forward.1} parent=1 // pred_region
      _
    $region25: #{vae_fader_forward.1} parent=1 // pred_fallthru
      _
    // Predicated region
    $region26: #{vae_fader_forward.1} parent=1 // pred_check
      _
    $region27: #{vae_fader_forward.1} parent=1 // pred_check_branch
      %30 = sbr.rel (0) target = $region29
    $region28: #{vae_fader_forward.1} parent=1 // pred_region
      _
    $region29: #{vae_fader_forward.1} parent=1 // pred_fallthru
      _
    // Predicated region
    $region30: #{vae_fader_forward.1} parent=1 // pred_check
      _
    $region31: #{vae_fader_forward.1} parent=1 // pred_check_branch
      %32 = sbr.rel (0) target = $region33
    $region32: #{vae_fader_forward.1} parent=1 // pred_region
      _
    $region33: #{vae_fader_forward.1} parent=1 // pred_fallthru
      _
    // Predicated region
    $region34: #{vae_fader_forward.1} parent=1 // pred_check
      _
    $region35: #{vae_fader_forward.1} parent=1 // pred_check_branch
      %34 = sbr.rel (0) target = $region37
    $region36: #{vae_fader_forward.1} parent=1 // pred_region
      _
    $region37: #{vae_fader_forward.1} parent=1 // pred_fallthru
      _
    %v36 = vld [vmem:[%s0] sm:$0xff]
    %v37 = vld [vmem:[%s0 + $0x8] sm:$0xff]
    %v38 = vld [vmem:[%s0 + $0x10] sm:$0xff]
    %v39 = vld [vmem:[%s0 + $0x18] sm:$0xff]
    %v40 = vpack.c.bf16 %v37, %v36
    %v41 = vpack.c.bf16 %v39, %v38
    %v42 = vld [vmem:[%s3] sm:$0xf]
    %v43 = vld [vmem:[%s3 + $0x4] sm:$0xf]
    %v44 = vld [vmem:[%s3 + $0x8] sm:$0xf]
    %v45 = vld [vmem:[%s3 + $0xc] sm:$0xf]
    %v46 = vld [vmem:[%s3 + $0x10] sm:$0xf]
    %v47 = vld [vmem:[%s3 + $0x14] sm:$0xf]
    %v48 = vld [vmem:[%s3 + $0x18] sm:$0xf]
    %v49 = vld [vmem:[%s3 + $0x1c] sm:$0xf]
    %v50 = vld [vmem:[%s3 + $0x20] sm:$0xf]
    %v51 = vld [vmem:[%s3 + $0x24] sm:$0xf]
    %v52 = vld [vmem:[%s3 + $0x28] sm:$0xf]
    %v53 = vld [vmem:[%s3 + $0x2c] sm:$0xf]
    %v54 = vld [vmem:[%s3 + $0x30] sm:$0xf]
    %v55 = vld [vmem:[%s3 + $0x34] sm:$0xf]
    %v56 = vld [vmem:[%s3 + $0x38] sm:$0xf]
    %v57 = vld [vmem:[%s3 + $0x3c] sm:$0xf]
    %v58 = vld [vmem:[%s4] sm:$0x1]
    %v60 = vlaneseq
    %v61 = vshrl.u32 %v60, 7
    %v62 = vsub.s32 0, %v61
    %v63 = vrot.slane %v58, %v62
    %v81 = vunpack.c.l.b16 %v42
    %v82 = vunpack.c.l.b16 %v43
    %v83 = vunpack.c.l.b16 %v44
    %v84 = vunpack.c.l.b16 %v45
    %v85 = vunpack.c.l.b16 %v46
    %v86 = vunpack.c.l.b16 %v47
    %v87 = vunpack.c.l.b16 %v48
    %v88 = vunpack.c.l.b16 %v49
    %v89 = vunpack.c.l.b16 %v50
    %v90 = vunpack.c.l.b16 %v51
    %v91 = vunpack.c.l.b16 %v52
    %v92 = vunpack.c.l.b16 %v53
    %v93 = vunpack.c.l.b16 %v54
    %v94 = vunpack.c.l.b16 %v55
    %v95 = vunpack.c.l.b16 %v56
    %v96 = vunpack.c.l.b16 %v57
    %v97 = vpack.c.b16 %v82, %v81
    %v98 = vpack.c.b16 %v84, %v83
    %v99 = vpack.c.b16 %v86, %v85
    %v100 = vpack.c.b16 %v88, %v87
    %v101 = vpack.c.b16 %v90, %v89
    %v102 = vpack.c.b16 %v92, %v91
    %v103 = vpack.c.b16 %v94, %v93
    %v104 = vpack.c.b16 %v96, %v95
    %113 = vmatprep.subr.bf16.mxu0 0
    %114 = vmatpush1.bf16.msra.mxu0 %v97
    %115 = vmatprep.subr.bf16.mxu0 0
    %116 = vmatpush1.bf16.msra.mxu0 %v98
    %117 = vmatprep.subr.bf16.mxu0 0
    %118 = vmatpush1.bf16.msra.mxu0 %v99
    %119 = vmatprep.subr.bf16.mxu0 0
    %120 = vmatpush1.bf16.msra.mxu0 %v100
    %121 = vmatprep.subr.bf16.mxu0 0
    %122 = vmatpush1.bf16.msra.mxu0 %v101
    %123 = vmatprep.subr.bf16.mxu0 0
    %124 = vmatpush1.bf16.msra.mxu0 %v102
    %125 = vmatprep.subr.bf16.mxu0 0
    %126 = vmatpush1.bf16.msra.mxu0 %v103
    %127 = vmatprep.subr.bf16.mxu0 0
    %128 = vmatpush1.bf16.msra.mxu0 %v104
    %129 = vmatprep.subr.bf16.mxu0 0
    %130 = vmatpush1.bf16.msra.mxu0 0
    %131 = vmatprep.subr.bf16.mxu0 0
    %132 = vmatpush1.bf16.msra.mxu0 0
    %133 = vmatprep.subr.bf16.mxu0 0
    %134 = vmatpush1.bf16.msra.mxu0 0
    %135 = vmatprep.subr.bf16.mxu0 0
    %136 = vmatpush1.bf16.msra.mxu0 0
    %137 = vmatprep.subr.bf16.mxu0 0
    %138 = vmatpush1.bf16.msra.mxu0 0
    %139 = vmatprep.subr.bf16.mxu0 0
    %140 = vmatpush1.bf16.msra.mxu0 0
    %141 = vmatprep.subr.bf16.mxu0 0
    %142 = vmatpush1.bf16.msra.mxu0 0
    %143 = vmatprep.subr.bf16.mxu0 0
    %144 = vmatpush1.bf16.msra.mxu0 0
    %145 = vmatprep.mubr.bf16.mxu0 0
    %146 = vmatmul.mubr.bf16.gmra.mrb[0].mxu0 %v40
    %v147 = vpop.f32.mrb[0].mxu0
    %v148 = vadd.f32 %v63, %v147
    %v149 = vpop.f32.mrb[0].mxu0
    %v150 = vpop.f32.mrb[0].mxu0
    %v151 = vadd.f32 %v63, %v150
    %v152 = vpop.f32.mrb[0].mxu0
    %153 = vmatprep.mubr.bf16.mxu0 0
    %154 = vmatmul.mubr.bf16.gmra.mrb[0].mxu0 %v41
    %v155 = vpop.f32.mrb[0].mxu0
    %v156 = vadd.f32 %v63, %v155
    %v157 = vpop.f32.mrb[0].mxu0
    %v158 = vpop.f32.mrb[0].mxu0
    %v159 = vadd.f32 %v63, %v158
    %v160 = vpop.f32.mrb[0].mxu0
    %161 = vdwg.mxu0
    %v162 = vtanh.pop %v148
    %v163 = vtanh.pop %v151
    %v164 = vtanh.pop %v156
    %v165 = vtanh.pop %v159
    %v166 = vpack.c.bf16 %v163, %v162
    %v167 = vpack.c.bf16 %v165, %v164
    %v168 = vld [vmem:[%s5] sm:$0xf]
    %v169 = vld [vmem:[%s5 + $0x4] sm:$0xf]
    %v170 = vld [vmem:[%s5 + $0x8] sm:$0xf]
    %v171 = vld [vmem:[%s5 + $0xc] sm:$0xf]
    %v172 = vld [vmem:[%s5 + $0x10] sm:$0xf]
    %v173 = vld [vmem:[%s5 + $0x14] sm:$0xf]
    %v174 = vld [vmem:[%s5 + $0x18] sm:$0xf]
    %v175 = vld [vmem:[%s5 + $0x1c] sm:$0xf]
    %v176 = vld [vmem:[%s5 + $0x20] sm:$0xf]
    %v177 = vld [vmem:[%s5 + $0x24] sm:$0xf]
    %v178 = vld [vmem:[%s5 + $0x28] sm:$0xf]
    %v179 = vld [vmem:[%s5 + $0x2c] sm:$0xf]
    %v180 = vld [vmem:[%s5 + $0x30] sm:$0xf]
    %v181 = vld [vmem:[%s5 + $0x34] sm:$0xf]
    %v182 = vld [vmem:[%s5 + $0x38] sm:$0xf]
    %v183 = vld [vmem:[%s5 + $0x3c] sm:$0xf]
    %v184 = vld [vmem:[%s6] sm:$0x1]
    %v186 = vlaneseq
    %v187 = vshrl.u32 %v186, 7
    %v188 = vsub.s32 0, %v187
    %v189 = vrot.slane %v184, %v188
    %v207 = vunpack.c.l.b16 %v168
    %v208 = vunpack.c.l.b16 %v169
    %v209 = vunpack.c.l.b16 %v170
    %v210 = vunpack.c.l.b16 %v171
    %v211 = vunpack.c.l.b16 %v172
    %v212 = vunpack.c.l.b16 %v173
    %v213 = vunpack.c.l.b16 %v174
    %v214 = vunpack.c.l.b16 %v175
    %v215 = vunpack.c.l.b16 %v176
    %v216 = vunpack.c.l.b16 %v177
    %v217 = vunpack.c.l.b16 %v178
    %v218 = vunpack.c.l.b16 %v179
    %v219 = vunpack.c.l.b16 %v180
    %v220 = vunpack.c.l.b16 %v181
    %v221 = vunpack.c.l.b16 %v182
    %v222 = vunpack.c.l.b16 %v183
    %v223 = vpack.c.b16 %v208, %v207
    %v224 = vpack.c.b16 %v210, %v209
    %v225 = vpack.c.b16 %v212, %v211
    %v226 = vpack.c.b16 %v214, %v213
    %v227 = vpack.c.b16 %v216, %v215
    %v228 = vpack.c.b16 %v218, %v217
    %v229 = vpack.c.b16 %v220, %v219
    %v230 = vpack.c.b16 %v222, %v221
    %239 = vmatprep.subr.bf16.mxu0 0
    %240 = vmatpush1.bf16.msra.mxu0 %v223
    %241 = vmatprep.subr.bf16.mxu0 0
    %242 = vmatpush1.bf16.msra.mxu0 %v224
    %243 = vmatprep.subr.bf16.mxu0 0
    %244 = vmatpush1.bf16.msra.mxu0 %v225
    %245 = vmatprep.subr.bf16.mxu0 0
    %246 = vmatpush1.bf16.msra.mxu0 %v226
    %247 = vmatprep.subr.bf16.mxu0 0
    %248 = vmatpush1.bf16.msra.mxu0 %v227
    %249 = vmatprep.subr.bf16.mxu0 0
    %250 = vmatpush1.bf16.msra.mxu0 %v228
    %251 = vmatprep.subr.bf16.mxu0 0
    %252 = vmatpush1.bf16.msra.mxu0 %v229
    %253 = vmatprep.subr.bf16.mxu0 0
    %254 = vmatpush1.bf16.msra.mxu0 %v230
    %255 = vmatprep.subr.bf16.mxu0 0
    %256 = vmatpush1.bf16.msra.mxu0 0
    %257 = vmatprep.subr.bf16.mxu0 0
    %258 = vmatpush1.bf16.msra.mxu0 0
    %259 = vmatprep.subr.bf16.mxu0 0
    %260 = vmatpush1.bf16.msra.mxu0 0
    %261 = vmatprep.subr.bf16.mxu0 0
    %262 = vmatpush1.bf16.msra.mxu0 0
    %263 = vmatprep.subr.bf16.mxu0 0
    %264 = vmatpush1.bf16.msra.mxu0 0
    %265 = vmatprep.subr.bf16.mxu0 0
    %266 = vmatpush1.bf16.msra.mxu0 0
    %267 = vmatprep.subr.bf16.mxu0 0
    %268 = vmatpush1.bf16.msra.mxu0 0
    %269 = vmatprep.subr.bf16.mxu0 0
    %270 = vmatpush1.bf16.msra.mxu0 0
    %271 = vmatprep.mubr.bf16.mxu0 0
    %272 = vmatmul.mubr.bf16.gmra.mrb[0].mxu0 %v166
    %v273 = vpop.f32.mrb[0].mxu0
    %v274 = vadd.f32 %v189, %v273
    %v275 = vpop.f32.mrb[0].mxu0
    %v276 = vpop.f32.mrb[0].mxu0
    %v277 = vadd.f32 %v189, %v276
    %v278 = vpop.f32.mrb[0].mxu0
    %279 = vmatprep.mubr.bf16.mxu0 0
    %280 = vmatmul.mubr.bf16.gmra.mrb[0].mxu0 %v167
    %v281 = vpop.f32.mrb[0].mxu0
    %v282 = vadd.f32 %v189, %v281
    %v283 = vpop.f32.mrb[0].mxu0
    %v284 = vpop.f32.mrb[0].mxu0
    %v285 = vadd.f32 %v189, %v284
    %v286 = vpop.f32.mrb[0].mxu0
    %287 = vdwg.mxu0
    %v288 = vmax.f32 %v274, 0.0
    %v289 = vmax.f32 %v277, 0.0
    %v290 = vmax.f32 %v282, 0.0
    %v291 = vmax.f32 %v285, 0.0
    %vm292 = vcmp.ne.f32.partialorder %v274, %v274
    %vm293 = vcmp.ne.f32.partialorder %v277, %v277
    %vm294 = vcmp.ne.f32.partialorder %v282, %v282
    %vm295 = vcmp.ne.f32.partialorder %v285, %v285
    %v296 = vadd.f32 %v274, 0.0
    %v297 = vadd.f32 %v277, 0.0
    %v298 = vadd.f32 %v282, 0.0
    %v299 = vadd.f32 %v285, 0.0
    %v300 = vand.u32 2147483647, %v274
    %v301 = vand.u32 2147483647, %v277
    %v302 = vand.u32 2147483647, %v282
    %v303 = vand.u32 2147483647, %v285
    %v304 = vsub.f32 0.0, %v300
    %v305 = vsub.f32 0.0, %v301
    %v306 = vsub.f32 0.0, %v302
    %v307 = vsub.f32 0.0, %v303
    %v308 = vmul.f32 %v304, 1.442695
    %v309 = vpow.pop %v308
    %v310 = vmul.f32 %v305, 1.442695
    %v311 = vpow.pop %v310
    %v312 = vmul.f32 %v306, 1.442695
    %v313 = vpow.pop %v312
    %v314 = vmul.f32 %v307, 1.442695
    %v315 = vpow.pop %v314
    %v316 = vadd.f32 %v309, 1.0
    %v317 = vlog2.pop %v316
    %v318 = vmul.f32 %v317, 0.6931472
    %v319 = vmul.f32 -0.5, %v309
    %v320 = vadd.f32 %v319, 1.0
    %v321 = vmul.f32 %v320, %v309
    %v322 = vand.u32 2147483647, %v309
    %vm323 = vcmp.lt.f32.partialorder %v322, 0.0004427343
    %v324 = vsel %vm323, %v321, %v318
    %v325 = vadd.f32 %v311, 1.0
    %v326 = vlog2.pop %v325
    %v327 = vmul.f32 %v326, 0.6931472
    %v328 = vmul.f32 -0.5, %v311
    %v329 = vadd.f32 %v328, 1.0
    %v330 = vmul.f32 %v329, %v311
    %v331 = vand.u32 2147483647, %v311
    %vm332 = vcmp.lt.f32.partialorder %v331, 0.0004427343
    %v333 = vsel %vm332, %v330, %v327
    %v334 = vadd.f32 %v313, 1.0
    %v335 = vlog2.pop %v334
    %v336 = vmul.f32 %v335, 0.6931472
    %v337 = vmul.f32 -0.5, %v313
    %v338 = vadd.f32 %v337, 1.0
    %v339 = vmul.f32 %v338, %v313
    %v340 = vand.u32 2147483647, %v313
    %vm341 = vcmp.lt.f32.partialorder %v340, 0.0004427343
    %v342 = vsel %vm341, %v339, %v336
    %v343 = vadd.f32 %v315, 1.0
    %v344 = vlog2.pop %v343
    %v345 = vmul.f32 %v344, 0.6931472
    %v346 = vmul.f32 -0.5, %v315
    %v347 = vadd.f32 %v346, 1.0
    %v348 = vmul.f32 %v347, %v315
    %v349 = vand.u32 2147483647, %v315
    %vm350 = vcmp.lt.f32.partialorder %v349, 0.0004427343
    %v351 = vsel %vm350, %v348, %v345
    %v352 = vadd.f32 %v288, %v324
    %v353 = vadd.f32 %v289, %v333
    %v354 = vadd.f32 %v290, %v342
    %v355 = vadd.f32 %v291, %v351
    %v356 = vsel %vm292, %v296, %v352
    %v357 = vsel %vm293, %v297, %v353
    %v358 = vsel %vm294, %v298, %v354
    %v359 = vsel %vm295, %v299, %v355
    %vm360 = vcmp.lt.f32.partialorder %v274, -10.0
    %vm361 = vcmp.lt.f32.partialorder %v277, -10.0
    %vm362 = vcmp.lt.f32.partialorder %v282, -10.0
    %vm363 = vcmp.lt.f32.partialorder %v285, -10.0
    %v364 = vmax.f32 %v356, 1e-38
    %v365 = vmax.f32 %v357, 1e-38
    %v366 = vmax.f32 %v358, 1e-38
    %v367 = vmax.f32 %v359, 1e-38
    %v368 = vlog2.pop %v364
    %v369 = vmul.f32 %v368, 0.6931472
    %v370 = vlog2.pop %v365
    %v371 = vmul.f32 %v370, 0.6931472
    %v372 = vlog2.pop %v366
    %v373 = vmul.f32 %v372, 0.6931472
    %v374 = vlog2.pop %v367
    %v375 = vmul.f32 %v374, 0.6931472
    %v376 = vsel %vm360, %v274, %v369
    %v377 = vsel %vm361, %v277, %v371
    %v378 = vsel %vm362, %v282, %v373
    %v379 = vsel %vm363, %v285, %v375
    %v380 = vld [vmem:[%s2] sm:$0xff]
    %v381 = vld [vmem:[%s2 + $0x8] sm:$0xff]
    %v382 = vld [vmem:[%s2 + $0x10] sm:$0xff]
    %v383 = vld [vmem:[%s2 + $0x18] sm:$0xff]
    %388 = vrot.lane.b32.xlu0 %v380, 16
    %v389 = vpop.permute.xlu0 %388
    %390 = vrot.lane.b32.xlu0 %v381, 16
    %v391 = vpop.permute.xlu0 %390
    %392 = vrot.lane.b32.xlu0 %v382, 16
    %v393 = vpop.permute.xlu0 %392
    %394 = vrot.lane.b32.xlu0 %v383, 16
    %v395 = vpop.permute.xlu0 %394
    %v400 = vmul.f32 %v356, %v389
    %v401 = vmul.f32 %v357, %v391
    %v402 = vmul.f32 %v358, %v393
    %v403 = vmul.f32 %v359, %v395
    %408 = vrot.lane.b32.xlu0 %v400, 112
    %v409 = vpop.permute.xlu0 %408
    %410 = vrot.lane.b32.xlu0 %v401, 112
    %v411 = vpop.permute.xlu0 %410
    %412 = vrot.lane.b32.xlu0 %v402, 112
    %v413 = vpop.permute.xlu0 %412
    %414 = vrot.lane.b32.xlu0 %v403, 112
    %v415 = vpop.permute.xlu0 %414
    %v420 = vadd.f32 %v274, %v409
    %v421 = vadd.f32 %v277, %v411
    %v422 = vadd.f32 %v282, %v413
    %v423 = vadd.f32 %v285, %v415
    %v424 = vadd.f32 %v376, 1.0
    %v425 = vadd.f32 %v377, 1.0
    %v426 = vadd.f32 %v378, 1.0
    %v427 = vadd.f32 %v379, 1.0
    %v428 = vmul.f32 %v274, %v274
    %v429 = vmul.f32 %v277, %v277
    %v430 = vmul.f32 %v282, %v282
    %v431 = vmul.f32 %v285, %v285
    %436 = vrot.lane.b32.xlu0 %v428, 16
    %v437 = vpop.permute.xlu0 %436
    %438 = vrot.lane.b32.xlu0 %v429, 16
    %v439 = vpop.permute.xlu0 %438
    %440 = vrot.lane.b32.xlu0 %v430, 16
    %v441 = vpop.permute.xlu0 %440
    %442 = vrot.lane.b32.xlu0 %v431, 16
    %v443 = vpop.permute.xlu0 %442
    %v448 = vsub.f32 %v424, %v437
    %v449 = vsub.f32 %v425, %v439
    %v450 = vsub.f32 %v426, %v441
    %v451 = vsub.f32 %v427, %v443
    %v452 = vsub.f32 %v448, %v356
    %v453 = vsub.f32 %v449, %v357
    %v454 = vsub.f32 %v450, %v358
    %v455 = vsub.f32 %v451, %v359
    %460 = vrot.lane.b32.xlu0 %v452, 112
    %v461 = vpop.permute.xlu0 %460
    %462 = vrot.lane.b32.xlu0 %v453, 112
    %v463 = vpop.permute.xlu0 %462
    %464 = vrot.lane.b32.xlu0 %v454, 112
    %v465 = vpop.permute.xlu0 %464
    %466 = vrot.lane.b32.xlu0 %v455, 112
    %v467 = vpop.permute.xlu0 %466
    %vm472 = vcmask 130048
    %v473 = vsel %vm472, %v461, 0.0
    %474 = vadd.xlane.f32.xlu0 %v473
    %v475 = vpop.xlane.xlu0 %474
    %v476 = vsel %vm472, %v463, 0.0
    %477 = vadd.xlane.f32.xlu0 %v476
    %v478 = vpop.xlane.xlu0 %477
    %v479 = vsel %vm472, %v465, 0.0
    %480 = vadd.xlane.f32.xlu0 %v479
    %v481 = vpop.xlane.xlu0 %480
    %v482 = vsel %vm472, %v467, 0.0
    %483 = vadd.xlane.f32.xlu0 %v482
    %v484 = vpop.xlane.xlu0 %483
    %v485 = vrcp.pop 16.0
    %v486 = vmul.f32 %v475, %v485
    %v487 = vmul.f32 %v478, %v485
    %v488 = vmul.f32 %v481, %v485
    %v489 = vmul.f32 %v484, %v485
    %v490 = vmul.f32 %v486, -0.5
    %v491 = vmul.f32 %v487, -0.5
    %v492 = vmul.f32 %v488, -0.5
    %v493 = vmul.f32 %v489, -0.5
    %v494 = vsel %vm472, %v420, %v490
    %v495 = vsel %vm472, %v421, %v491
    %v496 = vsel %vm472, %v422, %v492
    %v497 = vsel %vm472, %v423, %v493
    %vm498 = vcmask 138240
    %v499 = vsel %vm498, %v494, 0.0
    %v500 = vsel %vm498, %v495, 0.0
    %v501 = vsel %vm498, %v496, 0.0
    %v502 = vsel %vm498, %v497, 0.0
    %503 = vst [vmem:[%s9] sm:$0xff] %v499
    %504 = vst [vmem:[%s9 + $0x8] sm:$0xff] %v500
    %505 = vst [vmem:[%s9 + $0x10] sm:$0xff] %v501
    %506 = vst [vmem:[%s9 + $0x18] sm:$0xff] %v502
    %v507 = vpack.c.bf16 %v421, %v420
    %v508 = vpack.c.bf16 %v423, %v422
    %v509 = vld [vmem:[%s1] sm:$0xff]
    %v510 = vld [vmem:[%s1 + $0x8] sm:$0xff]
    %v511 = vld [vmem:[%s1 + $0x10] sm:$0xff]
    %v512 = vld [vmem:[%s1 + $0x18] sm:$0xff]
    %v513 = vpack.c.bf16 %v510, %v509
    %v514 = vpack.c.bf16 %v512, %v511
    %517 = vrot.lane.b32.xlu0 %v513, 16
    %v518 = vpop.permute.xlu0 %517
    %519 = vrot.lane.b32.xlu0 %v514, 16
    %v520 = vpop.permute.xlu0 %519
    %v523 = vsel %vm472, %v507, %v518
    %v526 = vsel %vm472, %v508, %v520
    %v527 = vld [vmem:[%s7] sm:$0xf]
    %v528 = vld [vmem:[%s7 + $0x4] sm:$0xf]
    %v529 = vld [vmem:[%s7 + $0x8] sm:$0x3]
    %v530 = vld [vmem:[%s8] sm:$0x1]
    %v532 = vlaneseq
    %v533 = vshrl.u32 %v532, 7
    %v534 = vsub.s32 0, %v533
    %v535 = vrot.slane %v530, %v534
    %v540 = vunpack.c.l.b16 %v527
    %v541 = vunpack.c.l.b16 %v528
    %v542 = vunpack.c.l.b16 %v529
    %v543 = vpack.c.b16 %v541, %v540
    %v544 = vpack.c.b16 %v542, %v542
    %vm546 = vcmask 162816
    %v547 = vsel %vm546, %v523, 0
    %v549 = vsel %vm546, %v526, 0
    %vm551 = vcmask 1041408
    %v553 = vsel %vm551, %v544, 0
    %555 = vmatprep.subr.bf16.mxu0 0
    %556 = vmatpush1.bf16.msra.mxu0 %v543
    %557 = vmatprep.subr.bf16.mxu0 0
    %558 = vmatpush1.bf16.msra.mxu0 %v553
    %559 = vmatprep.subr.bf16.mxu0 0
    %560 = vmatpush1.bf16.msra.mxu0 0
    %561 = vmatprep.subr.bf16.mxu0 0
    %562 = vmatpush1.bf16.msra.mxu0 0
    %563 = vmatprep.subr.bf16.mxu0 0
    %564 = vmatpush1.bf16.msra.mxu0 0
    %565 = vmatprep.subr.bf16.mxu0 0
    %566 = vmatpush1.bf16.msra.mxu0 0
    %567 = vmatprep.subr.bf16.mxu0 0
    %568 = vmatpush1.bf16.msra.mxu0 0
    %569 = vmatprep.subr.bf16.mxu0 0
    %570 = vmatpush1.bf16.msra.mxu0 0
    %571 = vmatprep.subr.bf16.mxu0 0
    %572 = vmatpush1.bf16.msra.mxu0 0
    %573 = vmatprep.subr.bf16.mxu0 0
    %574 = vmatpush1.bf16.msra.mxu0 0
    %575 = vmatprep.subr.bf16.mxu0 0
    %576 = vmatpush1.bf16.msra.mxu0 0
    %577 = vmatprep.subr.bf16.mxu0 0
    %578 = vmatpush1.bf16.msra.mxu0 0
    %579 = vmatprep.subr.bf16.mxu0 0
    %580 = vmatpush1.bf16.msra.mxu0 0
    %581 = vmatprep.subr.bf16.mxu0 0
    %582 = vmatpush1.bf16.msra.mxu0 0
    %583 = vmatprep.subr.bf16.mxu0 0
    %584 = vmatpush1.bf16.msra.mxu0 0
    %585 = vmatprep.subr.bf16.mxu0 0
    %586 = vmatpush1.bf16.msra.mxu0 0
    %587 = vmatprep.mubr.bf16.mxu0 0
    %588 = vmatmul.mubr.bf16.gmra.mrb[0].mxu0 %v547
    %v589 = vpop.f32.mrb[0].mxu0
    %v590 = vadd.f32 %v535, %v589
    %v591 = vpop.f32.mrb[0].mxu0
    %v592 = vpop.f32.mrb[0].mxu0
    %v593 = vadd.f32 %v535, %v592
    %v594 = vpop.f32.mrb[0].mxu0
    %595 = vmatprep.mubr.bf16.mxu0 0
    %596 = vmatmul.mubr.bf16.gmra.mrb[0].mxu0 %v549
    %v597 = vpop.f32.mrb[0].mxu0
    %v598 = vadd.f32 %v535, %v597
    %v599 = vpop.f32.mrb[0].mxu0
    %v600 = vpop.f32.mrb[0].mxu0
    %v601 = vadd.f32 %v535, %v600
    %v602 = vpop.f32.mrb[0].mxu0
    %603 = vdwg.mxu0
    %604 = vst [vmem:[#allocation2] sm:$0xff] %v590
    %605 = vst [vmem:[#allocation2 + $0x8] sm:$0xff] %v593
    %606 = vst [vmem:[#allocation2 + $0x10] sm:$0xff] %v598
    %607 = vst [vmem:[#allocation2 + $0x18] sm:$0xff] %v601
    // Predicated region
    $region38: #{vae_fader_forward.1} parent=1 // pred_check
      _
    $region39: #{vae_fader_forward.1} parent=1 // pred_check_branch
      %609 = sbr.rel (0) target = $region41
    $region40: #{vae_fader_forward.1} parent=1 // pred_region
      _
    $region41: #{vae_fader_forward.1} parent=1 // pred_fallthru
      _
    // Predicated region
    $region42: #{vae_fader_forward.1} parent=1 // pred_check
      _
    $region43: #{vae_fader_forward.1} parent=1 // pred_check_branch
      %611 = sbr.rel (0) target = $region45
    $region44: #{vae_fader_forward.1} parent=1 // pred_region
      %s613 = ssub.s32 512, 512
      %614 = vsyncadd [#allocation3], %s613
      %s615 = sshll.u32 [#allocation2], 4
      %s616 = int_to_ptr.vmem [resolvable:$true] %s615
      %621 = dma.vmem_to_hbm [thread:$0]  %s616, 512, %s10, [#allocation3], 128, 128, 8
    $region45: #{vae_fader_forward.1} parent=1 // pred_fallthru
      _
    // Predicated region
    $region46: #{vae_fader_forward.1} parent=1 // pred_check
      _
    $region47: #{vae_fader_forward.1} parent=1 // pred_check_branch
      %623 = sbr.rel (0) target = $region49
    $region48: #{vae_fader_forward.1} parent=1 // pred_region
      _
    $region49: #{vae_fader_forward.1} parent=1 // pred_fallthru
      _
    // Predicated region
    $region50: #{vae_fader_forward.1} parent=1 // pred_check
      _
    $region51: #{vae_fader_forward.1} parent=1 // pred_check_branch
      %625 = sbr.rel (0) target = $region53
    $region52: #{vae_fader_forward.1} parent=1 // pred_region
      %626 = dma.done [#allocation3], 512
    $region53: #{vae_fader_forward.1} parent=1 // pred_fallthru
      _
    %627 = vsyncpa [#allocation3], 1

</llo_original>
